<compile_context>
chip_gen: v5e
topology: v5e:2x2
jax: 0.10.0
libtpu: 0.0.40
codegen_flags: <defaults>
</compile_context>

<pallas_src>
import functools

import jax
import jax.numpy as jnp
import numpy as np
from jax import lax
from jax.experimental import pallas as pl
from jax.experimental.pallas import tpu as pltpu

LOG_2PI = 1.8378770664093453  # log(2*pi)


def gmm_kernel(x_ref, means_ref, log_stds_ref, weights_ref, noise_ref,
               resampled_ref, idx_ref, q_ref, *, scale):
    x = x_ref[...]            # (B, D) f32
    mu = means_ref[...]       # (K, D) f32
    ls = log_stds_ref[...]    # (K, D) f32
    w = weights_ref[...]      # (1, K) f32
    noise = noise_ref[...]    # (B, D) f32

    B, D = x.shape
    K = mu.shape[0]
    f32 = jnp.float32

    # ---- parameter-derived terms (K*D work only: EUP/VPU) ----
    inv_var = jnp.exp(-2.0 * ls)                                  # (K, D)
    std = jnp.exp(ls)                                             # (K, D)
    # per-component constant: -0.5*sum mu^2*iv - sum ls  (the -0.5*D*log2pi
    # term is added after the matmul as a scalar)
    c_col = (-0.5 * jnp.sum(mu * mu * inv_var, axis=1, keepdims=True)
             - jnp.sum(ls, axis=1, keepdims=True))                # (K, 1)

    # ---- component log-probs via quadratic expansion, one MXU matmul ----
    #   log N(x | mu_k, sigma_k) summed over D
    #     = -0.5*sum_d x^2*iv + sum_d x*mu*iv - 0.5*sum_d mu^2*iv
    #       - sum_d ls - 0.5*D*log(2*pi)
    # Fold the per-component constant into the contraction via a ones column.
    ones_col = jnp.ones((B, 1), f32)
    a_op = jnp.concatenate([x * x, x, ones_col], axis=1)          # (B, 2D+1)
    w_op = jnp.concatenate([-0.5 * inv_var, mu * inv_var, c_col], axis=1)  # (K, 2D+1)
    log_p_x_z = lax.dot_general(
        a_op, w_op, (((1,), (1,)), ((), ())),
        precision=lax.Precision.HIGHEST,
        preferred_element_type=f32) - 0.5 * D * LOG_2PI           # (B, K)

    # ---- mixture log-prior: log_softmax(weights) on (1, K) ----
    w_max = jnp.max(w, axis=-1, keepdims=True)
    w_shift = w - w_max
    log_p_z = w_shift - jnp.log(jnp.sum(jnp.exp(w_shift), axis=-1, keepdims=True))

    # ---- responsibilities: softmax(logits)  (+1e-8 constant shift dropped) ----
    logits = log_p_x_z + log_p_z                                  # (B, K)
    s_max = jnp.max(logits, axis=-1, keepdims=True)
    e = jnp.exp(logits - s_max)
    p_z_x = e / jnp.sum(e, axis=-1, keepdims=True)                # (B, K)

    # ---- argmax over components (first-occurrence, matches jnp/torch) ----
    iota_k = lax.broadcasted_iota(jnp.int32, (B, K), 1)
    p_max = jnp.max(p_z_x, axis=-1, keepdims=True)
    cand = jnp.where(p_z_x == p_max, iota_k, K)
    idxs = jnp.min(cand, axis=-1, keepdims=True)                  # (B, 1) int32

    # ---- Q = mean(p_z_x * (log_p_x_z + log_p_z)) over all B*K entries ----
    q = jnp.mean(p_z_x * logits)
    q_ref[...] = jnp.broadcast_to(q, (1, 1)).astype(f32)

    # ---- exact select/where gather of chosen mean / std (K is tiny) ----
    sel_mu = jnp.where(idxs == 0, mu[0:1, :], jnp.zeros((B, D), f32))
    sel_std = jnp.where(idxs == 0, std[0:1, :], jnp.zeros((B, D), f32))
    for k in range(1, K):
        m = idxs == k                                             # (B, 1) bool
        sel_mu = jnp.where(m, mu[k:k + 1, :], sel_mu)
        sel_std = jnp.where(m, std[k:k + 1, :], sel_std)

    # ---- resample: means[idxs] + exp(log_stds[idxs]) * noise * scale ----
    resampled_ref[...] = sel_mu + sel_std * noise * scale
    idx_ref[...] = idxs


def gmm_forward(x, means, log_stds, weights, noise, scale=0.1):
    B, D = x.shape
    K = means.shape[0]
    w2 = weights.reshape(1, K)

    kernel = functools.partial(gmm_kernel, scale=float(scale))
    vmem = pl.BlockSpec(memory_space=pltpu.MemorySpace.VMEM)
    resampled, idx2d, q = pl.pallas_call(
        kernel,
        out_shape=(
            jax.ShapeDtypeStruct((B, D), jnp.float32),
            jax.ShapeDtypeStruct((B, 1), jnp.int32),
            jax.ShapeDtypeStruct((1, 1), jnp.float32),
        ),
        in_specs=[vmem, vmem, vmem, vmem, vmem],
        out_specs=(vmem, vmem, vmem),
    )(x, means, log_stds, w2, noise)
    return resampled, idx2d[:, 0], q[0, 0]


def gmm_reference(x, means, log_stds, weights, noise, scale=0.1):
    """Plain-JAX reference mirroring the PyTorch neural_update + sample."""
    D = x.shape[1]
    diff = x[:, None, :] - means[None, :, :]
    z = diff * jnp.exp(-log_stds)[None, :, :]
    log_p_x_z = (-0.5 * jnp.sum(z * z, axis=-1)
                 - jnp.sum(log_stds, axis=-1)[None, :]
                 - 0.5 * D * LOG_2PI)
    log_p_z = jax.nn.log_softmax(weights, axis=-1)[None, :]
    logits = log_p_x_z + log_p_z
    p_z_x = jax.nn.softmax(logits + 1e-8, axis=-1)
    idxs = jnp.argmax(p_z_x, axis=-1)
    q = jnp.mean(p_z_x * logits)
    resampled = means[idxs] + jnp.exp(log_stds[idxs]) * noise * scale
    return resampled, idxs, q


if __name__ == "__main__":
    num_components = 4
    input_dim = 32
    batch = 8
    scale = 0.1

    key = jax.random.PRNGKey(0)
    k_means, k_stds, k_x, k_noise = jax.random.split(key, 4)

    # Deterministic "parameters" (shapes per GMM.__init__).
    means = jax.random.normal(k_means, (num_components, input_dim), jnp.float32)
    log_stds = jax.random.normal(k_stds, (num_components, input_dim), jnp.float32) * 0.5
    weights = jnp.ones((num_components,), jnp.float32)

    x = jax.random.normal(k_x, (batch, input_dim), jnp.float32)
    # torch.randn_like noise source, generated deterministically in plain JAX.
    noise = jax.random.normal(k_noise, (batch, input_dim), jnp.float32)

    resampled, idxs, q = gmm_forward(x, means, log_stds, weights, noise, scale)
    jax.block_until_ready((resampled, idxs, q))

    ref_resampled, ref_idxs, ref_q = gmm_reference(x, means, log_stds, weights, noise, scale)
    np.testing.assert_allclose(np.asarray(resampled), np.asarray(ref_resampled),
                               rtol=1e-5, atol=1e-5)
    np.testing.assert_array_equal(np.asarray(idxs), np.asarray(ref_idxs))
    # Q tolerance slightly looser than the others: the kernel uses the
    # algebraically reformulated (matmul) log-prob, which differs from the
    # direct-difference reference at the f32-reassociation level.
    np.testing.assert_allclose(float(q), float(ref_q), rtol=1e-4, atol=1e-5)

    print("KERNEL_OK")
</pallas_src>

<mosaic_0001>
module attributes {stable_mosaic.version = 11 : i64} {
  func.func @gmm_kernel(%arg0: memref<8x32xf32, #tpu.memory_space<vmem>>, %arg1: memref<4x32xf32, #tpu.memory_space<vmem>>, %arg2: memref<4x32xf32, #tpu.memory_space<vmem>>, %arg3: memref<1x4xf32, #tpu.memory_space<vmem>>, %arg4: memref<8x32xf32, #tpu.memory_space<vmem>>, %arg5: memref<8x32xf32, #tpu.memory_space<vmem>>, %arg6: memref<8x1xi32, #tpu.memory_space<vmem>>, %arg7: memref<1x1xf32, #tpu.memory_space<vmem>>) attributes {dimension_semantics = [], scalar_prefetch = 0 : i64, scratch_operands = 0 : i64, tpu.core_type = #tpu.core_type<tc>} {
    %c0 = arith.constant 0 : index
    %c0_0 = arith.constant 0 : index
    %0 = vector.load %arg0[%c0, %c0_0] : memref<8x32xf32, #tpu.memory_space<vmem>>, vector<8x32xf32>
    %c0_1 = arith.constant 0 : index
    %c0_2 = arith.constant 0 : index
    %1 = vector.load %arg1[%c0_1, %c0_2] : memref<4x32xf32, #tpu.memory_space<vmem>>, vector<4x32xf32>
    %c0_3 = arith.constant 0 : index
    %c0_4 = arith.constant 0 : index
    %2 = vector.load %arg2[%c0_3, %c0_4] : memref<4x32xf32, #tpu.memory_space<vmem>>, vector<4x32xf32>
    %c0_5 = arith.constant 0 : index
    %c0_6 = arith.constant 0 : index
    %3 = vector.load %arg3[%c0_5, %c0_6] : memref<1x4xf32, #tpu.memory_space<vmem>>, vector<1x4xf32>
    %c0_7 = arith.constant 0 : index
    %c0_8 = arith.constant 0 : index
    %4 = vector.load %arg4[%c0_7, %c0_8] : memref<8x32xf32, #tpu.memory_space<vmem>>, vector<8x32xf32>
    %cst = arith.constant -2.000000e+00 : f32
    %5 = vector.broadcast %cst : f32 to vector<4x32xf32>
    %6 = arith.mulf %5, %2 : vector<4x32xf32>
    %7 = math.exp %6 : vector<4x32xf32>
    %8 = math.exp %2 : vector<4x32xf32>
    %9 = arith.mulf %1, %1 : vector<4x32xf32>
    %10 = arith.mulf %9, %7 : vector<4x32xf32>
    %cst_9 = arith.constant dense<0.000000e+00> : vector<4xf32>
    %11 = vector.multi_reduction <add>, %10, %cst_9 [1] : vector<4x32xf32> to vector<4xf32>
    %12 = vector.shape_cast %11 : vector<4xf32> to vector<4x1xf32>
    %cst_10 = arith.constant -5.000000e-01 : f32
    %13 = vector.broadcast %cst_10 : f32 to vector<4x1xf32>
    %14 = arith.mulf %13, %12 : vector<4x1xf32>
    %cst_11 = arith.constant dense<0.000000e+00> : vector<4xf32>
    %15 = vector.multi_reduction <add>, %2, %cst_11 [1] : vector<4x32xf32> to vector<4xf32>
    %16 = vector.shape_cast %15 : vector<4xf32> to vector<4x1xf32>
    %17 = arith.subf %14, %16 : vector<4x1xf32>
    %cst_12 = arith.constant 1.000000e+00 : f32
    %18 = vector.broadcast %cst_12 : f32 to vector<8x1xf32>
    %19 = arith.mulf %0, %0 : vector<8x32xf32>
    %20 = tpu.concatenate %19, %0, %18 in 1 : vector<8x32xf32>, vector<8x32xf32>, vector<8x1xf32> -> vector<8x65xf32>
    %cst_13 = arith.constant -5.000000e-01 : f32
    %21 = vector.broadcast %cst_13 : f32 to vector<4x32xf32>
    %22 = arith.mulf %21, %7 : vector<4x32xf32>
    %23 = arith.mulf %1, %7 : vector<4x32xf32>
    %24 = tpu.concatenate %22, %23, %17 in 1 : vector<4x32xf32>, vector<4x32xf32>, vector<4x1xf32> -> vector<4x65xf32>
    %cst_14 = arith.constant dense<0.000000e+00> : vector<8x4xf32>
    %25 = tpu.matmul %20, %24, %cst_14 {dimension_numbers = #tpu.dot_dimension_numbers<[1], [1], [0], [0], [0, 0, 1, 0], [], []>, precision = #tpu.contract_precision<fp32>} : vector<8x65xf32>, vector<4x65xf32>, vector<8x4xf32> -> vector<8x4xf32>
    %cst_15 = arith.constant 29.4060326 : f32
    %26 = vector.broadcast %cst_15 : f32 to vector<8x4xf32>
    %27 = arith.subf %25, %26 : vector<8x4xf32>
    %cst_16 = arith.constant dense<0xFF800000> : vector<1xf32>
    %28 = vector.multi_reduction <maximumf>, %3, %cst_16 [1] : vector<1x4xf32> to vector<1xf32>
    %29 = vector.shape_cast %28 : vector<1xf32> to vector<1x1xf32>
    %30 = vector.broadcast %29 : vector<1x1xf32> to vector<1x4xf32>
    %31 = arith.subf %3, %30 : vector<1x4xf32>
    %32 = math.exp %31 : vector<1x4xf32>
    %cst_17 = arith.constant dense<0.000000e+00> : vector<1xf32>
    %33 = vector.multi_reduction <add>, %32, %cst_17 [1] : vector<1x4xf32> to vector<1xf32>
    %34 = vector.shape_cast %33 : vector<1xf32> to vector<1x1xf32>
    %35 = math.log %34 : vector<1x1xf32>
    %36 = vector.broadcast %35 : vector<1x1xf32> to vector<1x4xf32>
    %37 = arith.subf %31, %36 : vector<1x4xf32>
    %38 = vector.broadcast %37 : vector<1x4xf32> to vector<8x4xf32>
    %39 = arith.addf %27, %38 : vector<8x4xf32>
    %cst_18 = arith.constant dense<0xFF800000> : vector<8xf32>
    %40 = vector.multi_reduction <maximumf>, %39, %cst_18 [1] : vector<8x4xf32> to vector<8xf32>
    %41 = vector.shape_cast %40 : vector<8xf32> to vector<8x1xf32>
    %42 = vector.broadcast %41 : vector<8x1xf32> to vector<8x4xf32>
    %43 = arith.subf %39, %42 : vector<8x4xf32>
    %44 = math.exp %43 : vector<8x4xf32>
    %cst_19 = arith.constant dense<0.000000e+00> : vector<8xf32>
    %45 = vector.multi_reduction <add>, %44, %cst_19 [1] : vector<8x4xf32> to vector<8xf32>
    %46 = vector.shape_cast %45 : vector<8xf32> to vector<8x1xf32>
    %47 = vector.broadcast %46 : vector<8x1xf32> to vector<8x4xf32>
    %48 = arith.divf %44, %47 : vector<8x4xf32>
    %49 = tpu.iota {dimensions = array<i32: 1>} : vector<8x4xi32>
    %cst_20 = arith.constant dense<0xFF800000> : vector<8xf32>
    %50 = vector.multi_reduction <maximumf>, %48, %cst_20 [1] : vector<8x4xf32> to vector<8xf32>
    %51 = vector.shape_cast %50 : vector<8xf32> to vector<8x1xf32>
    %52 = vector.broadcast %51 : vector<8x1xf32> to vector<8x4xf32>
    %53 = arith.cmpf oeq, %48, %52 : vector<8x4xf32>
    %c4_i32 = arith.constant 4 : i32
    %54 = vector.broadcast %c4_i32 : i32 to vector<8x4xi32>
    %55 = arith.select %53, %49, %54 : vector<8x4xi1>, vector<8x4xi32>
    %cst_21 = arith.constant dense<2147483647> : vector<8xi32>
    %56 = vector.multi_reduction <minsi>, %55, %cst_21 [1] : vector<8x4xi32> to vector<8xi32>
    %57 = vector.shape_cast %56 : vector<8xi32> to vector<8x1xi32>
    %58 = arith.mulf %48, %39 : vector<8x4xf32>
    %59 = vector.shape_cast %58 : vector<8x4xf32> to vector<1x8x4xf32>
    %cst_22 = arith.constant dense<0.000000e+00> : vector<1xf32>
    %60 = vector.multi_reduction <add>, %59, %cst_22 [1, 2] : vector<1x8x4xf32> to vector<1xf32>
    %61 = vector.shape_cast %60 : vector<1xf32> to vector<1x1x1xf32>
    %62 = vector.extract %61[0, 0, 0] : f32 from vector<1x1x1xf32>
    %cst_23 = arith.constant 3.200000e+01 : f32
    %63 = arith.divf %62, %cst_23 : f32
    %64 = vector.broadcast %63 : f32 to vector<1x1xf32>
    %c0_24 = arith.constant 0 : index
    %c0_25 = arith.constant 0 : index
    %65 = vector.load %arg7[%c0_24, %c0_25] : memref<1x1xf32, #tpu.memory_space<vmem>>, vector<1x1xf32>
    tpu.vector_store %arg7[%c0_24, %c0_25], %64 {strides = array<i32>} : memref<1x1xf32, #tpu.memory_space<vmem>>, vector<1x1xf32>,
    %c0_i32 = arith.constant 0 : i32
    %66 = vector.broadcast %c0_i32 : i32 to vector<8x1xi32>
    %67 = arith.cmpi eq, %57, %66 : vector<8x1xi32>
    %68 = vector.extract_strided_slice %1 {offsets = [0, 0], sizes = [1, 32], strides = [1, 1]} : vector<4x32xf32> to vector<1x32xf32>
    %cst_26 = arith.constant 0.000000e+00 : f32
    %69 = vector.broadcast %cst_26 : f32 to vector<8x32xf32>
    %70 = vector.shape_cast %67 : vector<8x1xi1> to vector<8x1xi1>
    %71 = vector.broadcast %70 : vector<8x1xi1> to vector<8x32xi1>
    %72 = vector.shape_cast %68 : vector<1x32xf32> to vector<1x32xf32>
    %73 = vector.broadcast %72 : vector<1x32xf32> to vector<8x32xf32>
    %74 = arith.select %71, %73, %69 : vector<8x32xi1>, vector<8x32xf32>
    %c0_i32_27 = arith.constant 0 : i32
    %75 = vector.broadcast %c0_i32_27 : i32 to vector<8x1xi32>
    %76 = arith.cmpi eq, %57, %75 : vector<8x1xi32>
    %77 = vector.extract_strided_slice %8 {offsets = [0, 0], sizes = [1, 32], strides = [1, 1]} : vector<4x32xf32> to vector<1x32xf32>
    %cst_28 = arith.constant 0.000000e+00 : f32
    %78 = vector.broadcast %cst_28 : f32 to vector<8x32xf32>
    %79 = vector.shape_cast %76 : vector<8x1xi1> to vector<8x1xi1>
    %80 = vector.broadcast %79 : vector<8x1xi1> to vector<8x32xi1>
    %81 = vector.shape_cast %77 : vector<1x32xf32> to vector<1x32xf32>
    %82 = vector.broadcast %81 : vector<1x32xf32> to vector<8x32xf32>
    %83 = arith.select %80, %82, %78 : vector<8x32xi1>, vector<8x32xf32>
    %c1_i32 = arith.constant 1 : i32
    %84 = vector.broadcast %c1_i32 : i32 to vector<8x1xi32>
    %85 = arith.cmpi eq, %57, %84 : vector<8x1xi32>
    %86 = vector.extract_strided_slice %1 {offsets = [1, 0], sizes = [1, 32], strides = [1, 1]} : vector<4x32xf32> to vector<1x32xf32>
    %87 = vector.shape_cast %85 : vector<8x1xi1> to vector<8x1xi1>
    %88 = vector.broadcast %87 : vector<8x1xi1> to vector<8x32xi1>
    %89 = vector.shape_cast %86 : vector<1x32xf32> to vector<1x32xf32>
    %90 = vector.broadcast %89 : vector<1x32xf32> to vector<8x32xf32>
    %91 = arith.select %88, %90, %74 : vector<8x32xi1>, vector<8x32xf32>
    %92 = vector.extract_strided_slice %8 {offsets = [1, 0], sizes = [1, 32], strides = [1, 1]} : vector<4x32xf32> to vector<1x32xf32>
    %93 = vector.shape_cast %85 : vector<8x1xi1> to vector<8x1xi1>
    %94 = vector.broadcast %93 : vector<8x1xi1> to vector<8x32xi1>
    %95 = vector.shape_cast %92 : vector<1x32xf32> to vector<1x32xf32>
    %96 = vector.broadcast %95 : vector<1x32xf32> to vector<8x32xf32>
    %97 = arith.select %94, %96, %83 : vector<8x32xi1>, vector<8x32xf32>
    %c2_i32 = arith.constant 2 : i32
    %98 = vector.broadcast %c2_i32 : i32 to vector<8x1xi32>
    %99 = arith.cmpi eq, %57, %98 : vector<8x1xi32>
    %100 = vector.extract_strided_slice %1 {offsets = [2, 0], sizes = [1, 32], strides = [1, 1]} : vector<4x32xf32> to vector<1x32xf32>
    %101 = vector.shape_cast %99 : vector<8x1xi1> to vector<8x1xi1>
    %102 = vector.broadcast %101 : vector<8x1xi1> to vector<8x32xi1>
    %103 = vector.shape_cast %100 : vector<1x32xf32> to vector<1x32xf32>
    %104 = vector.broadcast %103 : vector<1x32xf32> to vector<8x32xf32>
    %105 = arith.select %102, %104, %91 : vector<8x32xi1>, vector<8x32xf32>
    %106 = vector.extract_strided_slice %8 {offsets = [2, 0], sizes = [1, 32], strides = [1, 1]} : vector<4x32xf32> to vector<1x32xf32>
    %107 = vector.shape_cast %99 : vector<8x1xi1> to vector<8x1xi1>
    %108 = vector.broadcast %107 : vector<8x1xi1> to vector<8x32xi1>
    %109 = vector.shape_cast %106 : vector<1x32xf32> to vector<1x32xf32>
    %110 = vector.broadcast %109 : vector<1x32xf32> to vector<8x32xf32>
    %111 = arith.select %108, %110, %97 : vector<8x32xi1>, vector<8x32xf32>
    %c3_i32 = arith.constant 3 : i32
    %112 = vector.broadcast %c3_i32 : i32 to vector<8x1xi32>
    %113 = arith.cmpi eq, %57, %112 : vector<8x1xi32>
    %114 = vector.extract_strided_slice %1 {offsets = [3, 0], sizes = [1, 32], strides = [1, 1]} : vector<4x32xf32> to vector<1x32xf32>
    %115 = vector.shape_cast %113 : vector<8x1xi1> to vector<8x1xi1>
    %116 = vector.broadcast %115 : vector<8x1xi1> to vector<8x32xi1>
    %117 = vector.shape_cast %114 : vector<1x32xf32> to vector<1x32xf32>
    %118 = vector.broadcast %117 : vector<1x32xf32> to vector<8x32xf32>
    %119 = arith.select %116, %118, %105 : vector<8x32xi1>, vector<8x32xf32>
    %120 = vector.extract_strided_slice %8 {offsets = [3, 0], sizes = [1, 32], strides = [1, 1]} : vector<4x32xf32> to vector<1x32xf32>
    %121 = vector.shape_cast %113 : vector<8x1xi1> to vector<8x1xi1>
    %122 = vector.broadcast %121 : vector<8x1xi1> to vector<8x32xi1>
    %123 = vector.shape_cast %120 : vector<1x32xf32> to vector<1x32xf32>
    %124 = vector.broadcast %123 : vector<1x32xf32> to vector<8x32xf32>
    %125 = arith.select %122, %124, %111 : vector<8x32xi1>, vector<8x32xf32>
    %126 = arith.mulf %125, %4 : vector<8x32xf32>
    %cst_29 = arith.constant 1.000000e-01 : f32
    %127 = vector.broadcast %cst_29 : f32 to vector<8x32xf32>
    %128 = arith.mulf %126, %127 : vector<8x32xf32>
    %129 = arith.addf %119, %128 : vector<8x32xf32>
    %c0_30 = arith.constant 0 : index
    %c0_31 = arith.constant 0 : index
    %130 = vector.load %arg5[%c0_30, %c0_31] : memref<8x32xf32, #tpu.memory_space<vmem>>, vector<8x32xf32>
    tpu.vector_store %arg5[%c0_30, %c0_31], %129 {strides = array<i32>} : memref<8x32xf32, #tpu.memory_space<vmem>>, vector<8x32xf32>,
    %c0_32 = arith.constant 0 : index
    %c0_33 = arith.constant 0 : index
    %131 = vector.load %arg6[%c0_32, %c0_33] : memref<8x1xi32, #tpu.memory_space<vmem>>, vector<8x1xi32>
    tpu.vector_store %arg6[%c0_32, %c0_33], %57 {strides = array<i32>} : memref<8x1xi32, #tpu.memory_space<vmem>>, vector<8x1xi32>,
    return
  }
}

</mosaic_0001>

<llo_original>
// kernel: tpu_custom_call.1
$region0: #{tpu_custom_call.1}
  #allocation0 [shape = 'u32[]', space=smem, size = 0x4, offset = 0x4, fixed_abs, tag = 'smem constant byte address 0x4 - core index']
  #allocation1 [shape = 'u32[72,128]{1,0:T(1,128)}', space=vmem, size = 0x9000, scoped, tag = 'internal scratch']
  %s0 = inlined_call_operand.hbm [shape: f32[8,32], index: 0, kind: input, shape index: {}]
  %s1 = inlined_call_operand.hbm [shape: f32[4,32], index: 1, kind: input, shape index: {}]
  %s2 = inlined_call_operand.hbm [shape: f32[4,32], index: 2, kind: input, shape index: {}]
  %s3 = inlined_call_operand.vmem [shape: f32[1,4], index: 3, kind: input, shape index: {}]
  %s4 = inlined_call_operand.hbm [shape: f32[8,32], index: 4, kind: input, shape index: {}]
  %s5 = inlined_call_operand.hbm [shape: f32[8,32], index: 5, kind: output, shape index: {0}]
  %s6 = inlined_call_operand.vmem [shape: s32[8,1], index: 6, kind: output, shape index: {1}]
  %s7 = inlined_call_operand.hbm [shape: f32[1,1], index: 7, kind: output, shape index: {2}]
  %8 = xla_tuple %s5, %s6, %s7
  %s9 = sld [smem:[#allocation0]]
  $region62: #{tpu_custom_call.1} parent=0
    _
  %s11 = ssub.s32 1, %s9
  %s12 = scalar_select 0, %s11, %s9
  $region1: #{tpu_custom_call.1} parent=0
    #allocation2 [shape = 'u8[4096]{0}', space=vmem, size = 0x1000, scoped, tag = 'input window, operand 0, single buffered']
    #allocation3 [shape = 's32[1]{0}', space=sflag, size = 0x4, scoped, tag = 'scoped memory for tpu_custom_call.1']
    #allocation4 [shape = 's32[1]{0}', space=sflag, size = 0x4, scoped, tag = 'scoped memory for tpu_custom_call.1']
    #allocation5 [shape = 'u8[2048]{0}', space=vmem, size = 0x800, scoped, tag = 'input window, operand 1, single buffered']
    #allocation6 [shape = 's32[1]{0}', space=sflag, size = 0x4, scoped, tag = 'scoped memory for tpu_custom_call.1']
    #allocation7 [shape = 'u8[2048]{0}', space=vmem, size = 0x800, scoped, tag = 'input window, operand 2, single buffered']
    #allocation8 [shape = 'u8[4096]{0}', space=vmem, size = 0x1000, scoped, tag = 'input window, operand 4, single buffered']
    #allocation9 [shape = 's32[1]{0}', space=sflag, size = 0x4, scoped, tag = 'scoped memory for tpu_custom_call.1']
    #allocation10 [shape = 'u8[4096]{0}', space=vmem, size = 0x1000, scoped, tag = 'output window, operand 0, single buffered']
    #allocation11 [shape = 'u8[512]{0}', space=vmem, size = 0x400, scoped, tag = 'output window, operand 2, single buffered']
    #allocation12 [shape = 's32[1]{0}', space=sflag, size = 0x4, scoped, tag = 'scoped memory for tpu_custom_call.1']
    %13 = vsyncpa [#allocation3], 0
    %14 = vsyncpa [#allocation6], 0
    %15 = vsyncpa [#allocation9], 0
    %16 = vsyncpa [#allocation4], 0
    %17 = vsyncpa [#allocation12], 0
    // Predicated region
    $region2: #{tpu_custom_call.1} parent=1 // pred_check
      _
    $region3: #{tpu_custom_call.1} parent=1 // pred_check_branch
      %19 = sbr.rel (0) target = $region5
    $region4: #{tpu_custom_call.1} parent=1 // pred_region
      %21 = vsyncadd [#allocation3], 0
      %s23 = sshll.u32 %s0, 4
      %s24 = int_to_ptr.hbm [resolvable:$true] %s23
      %s25 = sshll.u32 [#allocation2], 4
      %s26 = int_to_ptr.vmem [resolvable:$true] %s25
      %28 = dma.hbm_to_vmem [thread:$0]  %s24, 128, %s26, [#allocation3]
    $region5: #{tpu_custom_call.1} parent=1 // pred_fallthru
      _
    // Predicated region
    $region6: #{tpu_custom_call.1} parent=1 // pred_check
      _
    $region7: #{tpu_custom_call.1} parent=1 // pred_check_branch
      %30 = sbr.rel (0) target = $region9
    $region8: #{tpu_custom_call.1} parent=1 // pred_region
      %32 = vsyncadd [#allocation6], 0
      %s34 = sshll.u32 %s1, 4
      %s35 = int_to_ptr.hbm [resolvable:$true] %s34
      %s36 = sshll.u32 [#allocation5], 4
      %s37 = int_to_ptr.vmem [resolvable:$true] %s36
      %39 = dma.hbm_to_vmem [thread:$0]  %s35, 64, %s37, [#allocation6]
    $region9: #{tpu_custom_call.1} parent=1 // pred_fallthru
      _
    // Predicated region
    $region10: #{tpu_custom_call.1} parent=1 // pred_check
      _
    $region11: #{tpu_custom_call.1} parent=1 // pred_check_branch
      %41 = sbr.rel (0) target = $region13
    $region12: #{tpu_custom_call.1} parent=1 // pred_region
      %43 = vsyncadd [#allocation6], 0
      %s45 = sshll.u32 %s2, 4
      %s46 = int_to_ptr.hbm [resolvable:$true] %s45
      %s47 = sshll.u32 [#allocation7], 4
      %s48 = int_to_ptr.vmem [resolvable:$true] %s47
      %50 = dma.hbm_to_vmem [thread:$0]  %s46, 64, %s48, [#allocation6]
    $region13: #{tpu_custom_call.1} parent=1 // pred_fallthru
      _
    // Predicated region
    $region14: #{tpu_custom_call.1} parent=1 // pred_check
      _
    $region15: #{tpu_custom_call.1} parent=1 // pred_check_branch
      %52 = sbr.rel (0) target = $region17
    $region16: #{tpu_custom_call.1} parent=1 // pred_region
      _
    $region17: #{tpu_custom_call.1} parent=1 // pred_fallthru
      _
    // Predicated region
    $region18: #{tpu_custom_call.1} parent=1 // pred_check
      _
    $region19: #{tpu_custom_call.1} parent=1 // pred_check_branch
      %54 = sbr.rel (0) target = $region21
    $region20: #{tpu_custom_call.1} parent=1 // pred_region
      %56 = vsyncadd [#allocation9], 0
      %s58 = sshll.u32 %s4, 4
      %s59 = int_to_ptr.hbm [resolvable:$true] %s58
      %s60 = sshll.u32 [#allocation8], 4
      %s61 = int_to_ptr.vmem [resolvable:$true] %s60
      %63 = dma.hbm_to_vmem [thread:$0]  %s59, 128, %s61, [#allocation9]
    $region21: #{tpu_custom_call.1} parent=1 // pred_fallthru
      _
    // Predicated region
    $region22: #{tpu_custom_call.1} parent=1 // pred_check
      _
    $region23: #{tpu_custom_call.1} parent=1 // pred_check_branch
      %65 = sbr.rel (0) target = $region25
    $region24: #{tpu_custom_call.1} parent=1 // pred_region
      %67 = dma.done [#allocation3], 128
    $region25: #{tpu_custom_call.1} parent=1 // pred_fallthru
      _
    // Predicated region
    $region26: #{tpu_custom_call.1} parent=1 // pred_check
      _
    $region27: #{tpu_custom_call.1} parent=1 // pred_check_branch
      %69 = sbr.rel (0) target = $region29
    $region28: #{tpu_custom_call.1} parent=1 // pred_region
      %71 = dma.done [#allocation6], 64
    $region29: #{tpu_custom_call.1} parent=1 // pred_fallthru
      _
    // Predicated region
    $region30: #{tpu_custom_call.1} parent=1 // pred_check
      _
    $region31: #{tpu_custom_call.1} parent=1 // pred_check_branch
      %73 = sbr.rel (0) target = $region33
    $region32: #{tpu_custom_call.1} parent=1 // pred_region
      %75 = dma.done [#allocation6], 64
    $region33: #{tpu_custom_call.1} parent=1 // pred_fallthru
      _
    // Predicated region
    $region34: #{tpu_custom_call.1} parent=1 // pred_check
      _
    $region35: #{tpu_custom_call.1} parent=1 // pred_check_branch
      %77 = sbr.rel (0) target = $region37
    $region36: #{tpu_custom_call.1} parent=1 // pred_region
      %79 = dma.done [#allocation9], 128
    $region37: #{tpu_custom_call.1} parent=1 // pred_fallthru
      _
    %v80 = vld [vmem:[#allocation2] sm:$0xff]
    %v81 = vld [vmem:[#allocation5] sm:$0xf]
    %v82 = vld [vmem:[#allocation7] sm:$0xf]
    %v83 = vld [vmem:[%s3] sm:$0x1]
    %v84 = vld [vmem:[#allocation8] sm:$0xff]
    %v85 = vmul.f32 %v82, -2.0
    %v86 = vmul.f32 %v85, 1.442695
    %v87 = vpow.pop %v86
    %v88 = vmul.f32 %v82, 1.442695
    %v89 = vpow.pop %v88
    %v90 = vmul.f32 %v81, %v81
    %v91 = vmul.f32 %v90, %v87
    %vm92 = vcmask 257024
    %v93 = vsel %vm92, %v91, 0.0
    %94 = vadd.xlane.f32.xlu0 %v93
    %v95 = vpop.xlane.xlu0 %94
    %v96 = vmul.f32 %v95, -0.5
    %v97 = vsel %vm92, %v82, 0.0
    %98 = vadd.xlane.f32.xlu0 %v97
    %v99 = vpop.xlane.xlu0 %98
    %v100 = vsub.f32 %v96, %v99
    %v101 = vmul.f32 %v80, %v80
    %103 = vrot.lane.b32.xlu0 %v80, 32
    %v104 = vpop.permute.xlu0 %103
    %vm106 = vcmask 261120
    %v107 = vsel %vm106, %v101, %v104
    %vm108 = vcmask 523264
    %v109 = vsel %vm108, %v107, 1.0
    %v110 = vmul.f32 %v87, -0.5
    %v111 = vmul.f32 %v81, %v87
    %113 = vrot.lane.b32.xlu0 %v111, 32
    %v114 = vpop.permute.xlu0 %113
    %v116 = vsel %vm106, %v110, %v114
    %v117 = vsel %vm108, %v116, %v100
    %vm118 = vcmask 531456
    %v120 = vsel %vm118, %v109, 0
    %v123 = vsel %vm118, %v117, 0
    %125 = vmatpush.xpose.msra.mxu0 0.0
    %126 = vmatpush.xpose.msra.mxu0 0.0
    %127 = vmatpush.xpose.msra.mxu0 0.0
    %128 = vmatpush.xpose.msra.mxu0 0.0
    %129 = vmatpush.xpose.msra.mxu0 0.0
    %130 = vmatpush.xpose.msra.mxu0 0.0
    %131 = vmatpush.xpose.msra.mxu0 0.0
    %132 = vmatpush.xpose.msra.mxu0 0.0
    %133 = vmatpush.xpose.msra.mxu0 0.0
    %134 = vmatpush.xpose.msra.mxu0 0.0
    %135 = vmatpush.xpose.msra.mxu0 0.0
    %136 = vmatpush.xpose.msra.mxu0 0.0
    %137 = vmatpush.xpose.msra.mxu0 0.0
    %138 = vmatpush.xpose.msra.mxu0 0.0
    %139 = vmatpush.xpose.msra.mxu0 0.0
    %v140 = vand.u32 %v123, 4294901760
    %141 = vmatpush.xpose.msra.mxu0 %v140
    %v142 = vand.u32 %v120, 4294901760
    %v143 = vsub.f32 %v120, %v142
    %v144 = vand.u32 %v143, 4294901760
    %v145 = vsub.f32 %v143, %v144
    %v146 = vand.u32 %v145, 4294901760
    %147 = vmatmul.f32.gmra.mxu0 %v146
    %v148 = vpop.f32.mrf.mxu0
    %v149 = vadd.f32 0.0, %v148
    %150 = vdwg.mxu0
    %151 = vmatpush.xpose.msra.mxu0 0.0
    %152 = vmatpush.xpose.msra.mxu0 0.0
    %153 = vmatpush.xpose.msra.mxu0 0.0
    %154 = vmatpush.xpose.msra.mxu0 0.0
    %155 = vmatpush.xpose.msra.mxu0 0.0
    %156 = vmatpush.xpose.msra.mxu0 0.0
    %157 = vmatpush.xpose.msra.mxu0 0.0
    %158 = vmatpush.xpose.msra.mxu0 0.0
    %159 = vmatpush.xpose.msra.mxu0 0.0
    %160 = vmatpush.xpose.msra.mxu0 0.0
    %161 = vmatpush.xpose.msra.mxu0 0.0
    %162 = vmatpush.xpose.msra.mxu0 0.0
    %163 = vmatpush.xpose.msra.mxu0 0.0
    %164 = vmatpush.xpose.msra.mxu0 0.0
    %165 = vmatpush.xpose.msra.mxu0 0.0
    %v166 = vand.u32 %v123, 4294901760
    %v167 = vsub.f32 %v123, %v166
    %v168 = vand.u32 %v167, 4294901760
    %v169 = vsub.f32 %v167, %v168
    %v170 = vand.u32 %v169, 4294901760
    %171 = vmatpush.xpose.msra.mxu0 %v170
    %v172 = vand.u32 %v120, 4294901760
    %173 = vmatmul.f32.gmra.mxu0 %v172
    %v174 = vpop.f32.mrf.mxu0
    %v175 = vadd.f32 %v149, %v174
    %176 = vdwg.mxu0
    %177 = vmatpush.xpose.msra.mxu0 0.0
    %178 = vmatpush.xpose.msra.mxu0 0.0
    %179 = vmatpush.xpose.msra.mxu0 0.0
    %180 = vmatpush.xpose.msra.mxu0 0.0
    %181 = vmatpush.xpose.msra.mxu0 0.0
    %182 = vmatpush.xpose.msra.mxu0 0.0
    %183 = vmatpush.xpose.msra.mxu0 0.0
    %184 = vmatpush.xpose.msra.mxu0 0.0
    %185 = vmatpush.xpose.msra.mxu0 0.0
    %186 = vmatpush.xpose.msra.mxu0 0.0
    %187 = vmatpush.xpose.msra.mxu0 0.0
    %188 = vmatpush.xpose.msra.mxu0 0.0
    %189 = vmatpush.xpose.msra.mxu0 0.0
    %190 = vmatpush.xpose.msra.mxu0 0.0
    %191 = vmatpush.xpose.msra.mxu0 0.0
    %v192 = vand.u32 %v123, 4294901760
    %v193 = vsub.f32 %v123, %v192
    %194 = vmatpush.xpose.msra.mxu0 %v193
    %v195 = vand.u32 %v120, 4294901760
    %v196 = vsub.f32 %v120, %v195
    %197 = vmatmul.f32.gmra.mxu0 %v196
    %v198 = vpop.f32.mrf.mxu0
    %v199 = vadd.f32 %v175, %v198
    %200 = vdwg.mxu0
    %201 = vmatpush.xpose.msra.mxu0 0.0
    %202 = vmatpush.xpose.msra.mxu0 0.0
    %203 = vmatpush.xpose.msra.mxu0 0.0
    %204 = vmatpush.xpose.msra.mxu0 0.0
    %205 = vmatpush.xpose.msra.mxu0 0.0
    %206 = vmatpush.xpose.msra.mxu0 0.0
    %207 = vmatpush.xpose.msra.mxu0 0.0
    %208 = vmatpush.xpose.msra.mxu0 0.0
    %209 = vmatpush.xpose.msra.mxu0 0.0
    %210 = vmatpush.xpose.msra.mxu0 0.0
    %211 = vmatpush.xpose.msra.mxu0 0.0
    %212 = vmatpush.xpose.msra.mxu0 0.0
    %213 = vmatpush.xpose.msra.mxu0 0.0
    %214 = vmatpush.xpose.msra.mxu0 0.0
    %215 = vmatpush.xpose.msra.mxu0 0.0
    %v216 = vand.u32 %v123, 4294901760
    %217 = vmatpush.xpose.msra.mxu0 %v216
    %v218 = vand.u32 %v120, 4294901760
    %v219 = vsub.f32 %v120, %v218
    %v220 = vand.u32 %v219, 4294901760
    %221 = vmatmul.f32.gmra.mxu0 %v220
    %v222 = vpop.f32.mrf.mxu0
    %v223 = vadd.f32 %v199, %v222
    %224 = vdwg.mxu0
    %225 = vmatpush.xpose.msra.mxu0 0.0
    %226 = vmatpush.xpose.msra.mxu0 0.0
    %227 = vmatpush.xpose.msra.mxu0 0.0
    %228 = vmatpush.xpose.msra.mxu0 0.0
    %229 = vmatpush.xpose.msra.mxu0 0.0
    %230 = vmatpush.xpose.msra.mxu0 0.0
    %231 = vmatpush.xpose.msra.mxu0 0.0
    %232 = vmatpush.xpose.msra.mxu0 0.0
    %233 = vmatpush.xpose.msra.mxu0 0.0
    %234 = vmatpush.xpose.msra.mxu0 0.0
    %235 = vmatpush.xpose.msra.mxu0 0.0
    %236 = vmatpush.xpose.msra.mxu0 0.0
    %237 = vmatpush.xpose.msra.mxu0 0.0
    %238 = vmatpush.xpose.msra.mxu0 0.0
    %239 = vmatpush.xpose.msra.mxu0 0.0
    %v240 = vand.u32 %v123, 4294901760
    %v241 = vsub.f32 %v123, %v240
    %v242 = vand.u32 %v241, 4294901760
    %243 = vmatpush.xpose.msra.mxu0 %v242
    %v244 = vand.u32 %v120, 4294901760
    %245 = vmatmul.f32.gmra.mxu0 %v244
    %v246 = vpop.f32.mrf.mxu0
    %v247 = vadd.f32 %v223, %v246
    %248 = vdwg.mxu0
    %249 = vmatpush.xpose.msra.mxu0 0.0
    %250 = vmatpush.xpose.msra.mxu0 0.0
    %251 = vmatpush.xpose.msra.mxu0 0.0
    %252 = vmatpush.xpose.msra.mxu0 0.0
    %253 = vmatpush.xpose.msra.mxu0 0.0
    %254 = vmatpush.xpose.msra.mxu0 0.0
    %255 = vmatpush.xpose.msra.mxu0 0.0
    %256 = vmatpush.xpose.msra.mxu0 0.0
    %257 = vmatpush.xpose.msra.mxu0 0.0
    %258 = vmatpush.xpose.msra.mxu0 0.0
    %259 = vmatpush.xpose.msra.mxu0 0.0
    %260 = vmatpush.xpose.msra.mxu0 0.0
    %261 = vmatpush.xpose.msra.mxu0 0.0
    %262 = vmatpush.xpose.msra.mxu0 0.0
    %263 = vmatpush.xpose.msra.mxu0 0.0
    %v264 = vand.u32 %v123, 4294901760
    %265 = vmatpush.xpose.msra.mxu0 %v264
    %v266 = vand.u32 %v120, 4294901760
    %267 = vmatmul.f32.gmra.mxu0 %v266
    %v268 = vpop.f32.mrf.mxu0
    %v269 = vadd.f32 %v247, %v268
    %270 = vdwg.mxu0
    %v271 = vsub.f32 %v269, 29.406033
    %vm272 = vcmask 24576
    %v273 = vsel %vm272, %v83, -inf
    %274 = vmax.xlane.f32.xlu0 %v273
    %v275 = vpop.xlane.xlu0 %274
    %v276 = vsub.f32 %v83, %v275
    %v277 = vmul.f32 %v276, 1.442695
    %v278 = vpow.pop %v277
    %v279 = vsel %vm272, %v278, 0.0
    %280 = vadd.xlane.f32.xlu0 %v279
    %v281 = vpop.xlane.xlu0 %280
    %v282 = vlog2.pop %v281
    %v283 = vmul.f32 %v282, 0.6931472
    %v284 = vsub.f32 %v276, %v283
    %v286 = vperm.slane %v284, 0
    %v288 = vadd.f32 %v271, %v286
    %vm289 = vcmask 31744
    %v290 = vsel %vm289, %v288, -inf
    %291 = vmax.xlane.f32.xlu0 %v290
    %v292 = vpop.xlane.xlu0 %291
    %v293 = vsub.f32 %v288, %v292
    %v294 = vmul.f32 %v293, 1.442695
    %v295 = vpow.pop %v294
    %v296 = vsel %vm289, %v295, 0.0
    %297 = vadd.xlane.f32.xlu0 %v296
    %v298 = vpop.xlane.xlu0 %297
    %v299 = vrcp.pop %v298
    %v300 = vmul.f32 %v298, %v299
    %v301 = vsub.f32 1.0, %v300
    %v302 = vmul.f32 %v299, %v301
    %v303 = vadd.f32 %v299, %v302
    %vm304 = vweird.f32 %v298
    %vm305 = vweird.f32 %v299
    %vm306 = vmor %vm304, %vm305
    %v307 = vsel %vm306, %v299, %v303
    %v308 = vand.u32 2147483647, %v298
    %vm309 = vcmp.eq.f32.partialorder %v308, 8.507059e+37
    %v310 = vand.u32 %v298, 2147483648
    %v311 = vor.u32 1.1754944e-38, %v310
    %v312 = vsel %vm309, %v311, %v307
    %v313 = vmul.f32 %v295, %v312
    %v314 = vlaneseq
    %v315 = vand.u32 %v314, 127
    %v316 = vsel %vm289, %v313, -inf
    %317 = vmax.xlane.f32.xlu0 %v316
    %v318 = vpop.xlane.xlu0 %317
    %vm319 = vcmp.eq.f32.partialorder %v313, %v318
    %v320 = vsel %vm319, %v315, 4
    %v321 = vsel %vm289, %v320, 2147483647
    %v322 = vand.u32 %v321, 65535
    %v323 = vshra.s32 %v321, 16
    %v324 = vcvt.s32.f32 %v322
    %v325 = vcvt.s32.f32 %v323
    %326 = vmin.xlane.f32.xlu0 %v325
    %v327 = vpop.xlane.xlu0 %326
    %vm328 = vcmp.eq.f32.partialorder %v325, %v327
    %v329 = vsel %vm328, %v324, inf
    %330 = vmin.xlane.f32.xlu0 %v329
    %v331 = vpop.xlane.xlu0 %330
    %v332 = vcvt.f32.s32 %v331
    %v333 = vcvt.f32.s32 %v327
    %v334 = vshll.u32 %v333, 16
    %v335 = vadd.s32 %v334, %v332
    %v336 = vmul.f32 %v313, %v288
    %v337 = vsel %vm289, %v336, 0.0
    %338 = vadd.xlane.f32.xlu0 %v337
    %v339 = vpop.xlane.xlu0 %338
    %v340 = vrot.slane %v339, 4
    %v341 = vadd.f32 %v339, %v340
    %v342 = vrot.slane %v341, 2
    %v343 = vadd.f32 %v341, %v342
    %v344 = vrot.slane %v343, 1
    %v345 = vadd.f32 %v343, %v344
    %s346 = vtos %v345
    %v347 = vrcp.pop 32.0
    %v348 = vmul.f32 32.0, %v347
    %v349 = vsub.f32 1.0, %v348
    %v350 = vmul.f32 %v347, %v349
    %v351 = vadd.f32 %v347, %v350
    %vm352 = vweird.f32 %v347
    %v353 = vsel %vm352, %v347, %v351
    %s354 = vtos %v353
    %s355 = smul.f32 %s346, %s354
    %v356 = vstv %s355
    %vm357 = vcmask 0
    %358 = vst.msk [vmem:[#allocation11] sm:$0x1] %vm357, %v356
    %vm359 = vcmp.eq.s32.totalorder %v335, 0
    %v360 = vsel %vm359, 1, 0
    %vm361 = vcmp.eq.s32.totalorder %v360, 1
    %v362 = vperm.slane %v81, 0
    %v363 = vsel %vm361, %v362, 0.0
    %v364 = vperm.slane %v89, 0
    %v365 = vsel %vm361, %v364, 0.0
    %vm366 = vcmp.eq.s32.totalorder %v335, 1
    %v367 = vsel %vm366, 1, 0
    %vm368 = vcmp.eq.s32.totalorder %v367, 1
    %v369 = vperm.slane %v81, 1
    %v370 = vsel %vm368, %v369, %v363
    %v371 = vperm.slane %v89, 1
    %v372 = vsel %vm368, %v371, %v365
    %vm373 = vcmp.eq.s32.totalorder %v335, 2
    %v374 = vsel %vm373, 1, 0
    %vm375 = vcmp.eq.s32.totalorder %v374, 1
    %v376 = vperm.slane %v81, 2
    %v377 = vsel %vm375, %v376, %v370
    %v378 = vperm.slane %v89, 2
    %v379 = vsel %vm375, %v378, %v372
    %vm380 = vcmp.eq.s32.totalorder %v335, 3
    %v381 = vsel %vm380, 1, 0
    %vm382 = vcmp.eq.s32.totalorder %v381, 1
    %v383 = vperm.slane %v81, 3
    %v384 = vsel %vm382, %v383, %v377
    %v385 = vperm.slane %v89, 3
    %v386 = vsel %vm382, %v385, %v379
    %v387 = vmul.f32 %v386, %v84
    %v388 = vmul.f32 %v387, 0.1
    %v389 = vadd.f32 %v384, %v388
    %390 = vst.msk [vmem:[#allocation10] sm:$0xff] %vm106, %v389
    %vm391 = vcmask 7168
    %392 = vst.msk [vmem:[%s6] sm:$0xff] %vm391, %v335
    // Predicated region
    $region38: #{tpu_custom_call.1} parent=1 // pred_check
      _
    $region39: #{tpu_custom_call.1} parent=1 // pred_check_branch
      %394 = sbr.rel (0) target = $region41
    $region40: #{tpu_custom_call.1} parent=1 // pred_region
      %396 = vsyncadd [#allocation4], 0
      %s398 = sshll.u32 [#allocation10], 4
      %s399 = int_to_ptr.vmem [resolvable:$true] %s398
      %s400 = sshll.u32 %s5, 4
      %s401 = int_to_ptr.hbm [resolvable:$true] %s400
      %403 = dma.vmem_to_hbm [thread:$0]  %s399, 128, %s401, [#allocation4]
    $region41: #{tpu_custom_call.1} parent=1 // pred_fallthru
      _
    // Predicated region
    $region42: #{tpu_custom_call.1} parent=1 // pred_check
      _
    $region43: #{tpu_custom_call.1} parent=1 // pred_check_branch
      %405 = sbr.rel (0) target = $region45
    $region44: #{tpu_custom_call.1} parent=1 // pred_region
      _
    $region45: #{tpu_custom_call.1} parent=1 // pred_fallthru
      _
    // Predicated region
    $region46: #{tpu_custom_call.1} parent=1 // pred_check
      _
    $region47: #{tpu_custom_call.1} parent=1 // pred_check_branch
      %407 = sbr.rel (0) target = $region49
    $region48: #{tpu_custom_call.1} parent=1 // pred_region
      %409 = vsyncadd [#allocation12], 0
      %s411 = sshll.u32 [#allocation11], 4
      %s412 = int_to_ptr.vmem [resolvable:$true] %s411
      %s413 = sshll.u32 %s7, 4
      %s414 = int_to_ptr.hbm [resolvable:$true] %s413
      %416 = dma.vmem_to_hbm [thread:$0]  %s412, 16, %s414, [#allocation12]
    $region49: #{tpu_custom_call.1} parent=1 // pred_fallthru
      _
    // Predicated region
    $region50: #{tpu_custom_call.1} parent=1 // pred_check
      _
    $region51: #{tpu_custom_call.1} parent=1 // pred_check_branch
      %418 = sbr.rel (0) target = $region53
    $region52: #{tpu_custom_call.1} parent=1 // pred_region
      %420 = dma.done [#allocation4], 128
    $region53: #{tpu_custom_call.1} parent=1 // pred_fallthru
      _
    // Predicated region
    $region54: #{tpu_custom_call.1} parent=1 // pred_check
      _
    $region55: #{tpu_custom_call.1} parent=1 // pred_check_branch
      %422 = sbr.rel (0) target = $region57
    $region56: #{tpu_custom_call.1} parent=1 // pred_region
      _
    $region57: #{tpu_custom_call.1} parent=1 // pred_fallthru
      _
    // Predicated region
    $region58: #{tpu_custom_call.1} parent=1 // pred_check
      _
    $region59: #{tpu_custom_call.1} parent=1 // pred_check_branch
      %424 = sbr.rel (0) target = $region61
    $region60: #{tpu_custom_call.1} parent=1 // pred_region
      %426 = dma.done [#allocation12], 16
    $region61: #{tpu_custom_call.1} parent=1 // pred_fallthru
      _
    %427 = vsyncpa [#allocation3], 1
    %428 = vsyncpa [#allocation6], 1
    %429 = vsyncpa [#allocation9], 1
    %430 = vsyncpa [#allocation4], 1
    %431 = vsyncpa [#allocation12], 1

</llo_original>
